<compile_context>
chip_gen: v5e
topology: v5e:2x2
jax: 0.10.0
libtpu: 0.0.40
codegen_flags: <defaults>
</compile_context>

<pallas_src>
import functools

import jax
import jax.numpy as jnp
from jax import lax
from jax.experimental import pallas as pl
from jax.experimental.pallas import tpu as pltpu


_LANE_WIDTH = 512                      # preferred lane-dense last dim (mult of 128)
_MAX_BLOCK_BYTES = 2 * 1024 * 1024     # per-array block; in+out double-buffered = 8 MiB


def _to_i32(v):
    """Reinterpret a Python int (mod 2**32) as a signed 32-bit value."""
    v &= 0xFFFFFFFF
    return v - (1 << 32) if v >= (1 << 31) else v


def _mix32(v):
    """lowbias32-style integer mixer (Python side, for seed whitening)."""
    v &= 0xFFFFFFFF
    v ^= v >> 16
    v = (v * 0x7FEB352D) & 0xFFFFFFFF
    v ^= v >> 15
    v = (v * 0x846CA68B) & 0xFFFFFFFF
    v ^= v >> 16
    return v


def _round_up(a, b):
    return ((a + b - 1) // b) * b


def _shr(v, n):
    """Single-op logical right shift on int32 (no extra AND / temporaries)."""
    return lax.shift_right_logical(v, jnp.int32(n))


def _xdropout_kernel(seed_ref, x_ref, o_ref, *, threshold, scale, tile_rows, width):
    i = pl.program_id(0)
    key1 = seed_ref[0]
    key2 = seed_ref[1]
    rows = x_ref.shape[0]

    # Per-row partial mix on a (rows, 1) int32 column: ~width/128x cheaper than
    # mixing the full tile.  Row index is global, so the mask is independent of
    # the tiling choice for a given (seed, layout).
    r = lax.broadcasted_iota(jnp.int32, (rows, 1), 0) + i * tile_rows
    r = r ^ key1
    r = r * jnp.int32(_to_i32(0x9E3779B1))
    r = r ^ _shr(r, 16)
    r = r * jnp.int32(_to_i32(0x85EBCA6B))
    r = r ^ _shr(r, 13)

    # Per-column partial mix on a (1, width) int32 row (a handful of vregs).
    c = lax.broadcasted_iota(jnp.int32, (1, width), 1)
    c = c ^ key2
    c = c * jnp.int32(_to_i32(0xC2B2AE35))
    c = c ^ _shr(c, 16)
    c = c * jnp.int32(_to_i32(0x27D4EB2F))
    c = c ^ _shr(c, 13)

    # Per-element combine + short avalanche so nearby rows/cols decorrelate.
    h = r + c
    h = h ^ _shr(h, 16)
    h = h * jnp.int32(_to_i32(0x7FEB352D))
    h = h ^ _shr(h, 13)

    # Integer threshold compare on 31 uniform bits: True = keep (prob = 1 - p).
    keep = (h & jnp.int32(0x7FFFFFFF)) < jnp.int32(threshold)

    xf = x_ref[...].astype(jnp.float32) * jnp.float32(scale)
    o_ref[...] = jnp.where(keep, xf, 0.0).astype(o_ref.dtype)


def stable_dropout(x, drop_prob, seed, training=True):
    """Forward of StableDropout. Identity in eval mode or when drop_prob == 0."""
    if (not training) or drop_prob <= 0.0 or x.size == 0:
        return x

    keep_prob = 1.0 - float(drop_prob)
    scale = 1.0 / keep_prob
    threshold = min(int(keep_prob * (1 << 31)), (1 << 31) - 1)

    orig_shape = x.shape
    dtype = x.dtype
    total = x.size
    itemsize = jnp.dtype(dtype).itemsize

    # Pick a lane-dense width that divides the element count so the reshape is
    # metadata-only (no HBM pad/slice copies).  Falls back to padding only when
    # total is not a multiple of 128.
    width = None
    for w in (_LANE_WIDTH, 256, 128):
        if total % w == 0:
            width = w
            break
    needs_pad = width is None
    if needs_pad:
        width = _LANE_WIDTH

    n_rows = pl.cdiv(total, width)
    # Sublane packing: 8 rows for 4-byte, 16 for 2-byte, 32 for 1-byte dtypes.
    sublane = max(8, 32 // itemsize)

    rows_cap = max(sublane, _MAX_BLOCK_BYTES // (width * itemsize))
    rows_cap -= rows_cap % sublane

    if n_rows <= sublane:
        tile_rows = n_rows                       # block == full row extent
    else:
        tile_rows = min(rows_cap, _round_up(n_rows, sublane))
        if n_rows > 2 * sublane:
            # Keep >= 2 grid steps so the parallel axis can feed both v7x cores.
            tile_rows = min(tile_rows,
                            max(sublane, _round_up(pl.cdiv(n_rows, 2), sublane)))
    grid = pl.cdiv(n_rows, tile_rows)            # ragged tail -> masked edge block

    if needs_pad:
        flat = jnp.pad(x.reshape(-1), (0, n_rows * width - total))
        x2 = flat.reshape(n_rows, width)
    else:
        x2 = x.reshape(n_rows, width)            # free (metadata-only) reshape

    # Whitened per-call seed material (two independent 32-bit keys).
    key1 = _mix32(seed * 0x9E3779B9 + 0x7F4A7C15)
    key2 = _mix32(seed * 0x85EBCA6B + 0x165667B1)
    seed_arr = jnp.asarray([_to_i32(key1), _to_i32(key2)], dtype=jnp.int32)

    kernel = functools.partial(
        _xdropout_kernel,
        threshold=threshold, scale=scale, tile_rows=tile_rows, width=width)

    out2 = pl.pallas_call(
        kernel,
        out_shape=jax.ShapeDtypeStruct((n_rows, width), dtype),
        grid_spec=pltpu.PrefetchScalarGridSpec(
            num_scalar_prefetch=1,   # seed keys land in SMEM
            grid=(grid,),
            in_specs=[pl.BlockSpec((tile_rows, width), lambda i, seeds: (i, 0))],
            out_specs=pl.BlockSpec((tile_rows, width), lambda i, seeds: (i, 0)),
        ),
        compiler_params=pltpu.CompilerParams(
            # Grid steps are independent (stateless hash PRNG) -> shardable.
            dimension_semantics=("parallel",),
            vmem_limit_bytes=32 * 1024 * 1024,
        ),
    )(seed_arr, x2)

    if needs_pad:
        return out2.reshape(-1)[:total].reshape(orig_shape)
    return out2.reshape(orig_shape)


def _check_dropout(x, y, drop_prob, lo, hi):
    kept = y != 0.0
    assert jnp.allclose(
        jnp.where(kept, y, 0.0),
        jnp.where(kept, x / (1.0 - drop_prob), 0.0),
        rtol=1e-6, atol=1e-6,
    )
    drop_frac = float(jnp.mean((~kept).astype(jnp.float32)))
    assert lo < drop_frac < hi, drop_frac


if __name__ == "__main__":
    key = jax.random.PRNGKey(0)
    batch, seq, hidden = 2, 8, 32
    drop_prob = 0.1

    x = jax.random.normal(key, (batch, seq, hidden), dtype=jnp.float32)

    # Training-mode dropout (the Pallas hot path, divisible case, single block).
    y = stable_dropout(x, drop_prob, seed=1234, training=True)
    y = jax.block_until_ready(y)
    assert y.shape == x.shape and y.dtype == x.dtype
    _check_dropout(x, y, drop_prob, 0.0, 0.4)

    # Different seeds give different masks.
    y2 = jax.block_until_ready(stable_dropout(x, drop_prob, seed=1235, training=True))
    assert not jnp.array_equal(y, y2)

    # Eval mode (identity path).
    y_eval = jax.block_until_ready(stable_dropout(x, drop_prob, seed=1234, training=False))
    assert jnp.array_equal(y_eval, x)

    # Multi-block case with a ragged row tail (exercises masked edge block).
    xb = jax.random.normal(jax.random.PRNGKey(1), (33, 256), dtype=jnp.float32)
    yb = jax.block_until_ready(stable_dropout(xb, drop_prob, seed=7, training=True))
    assert yb.shape == xb.shape and yb.dtype == xb.dtype
    _check_dropout(xb, yb, drop_prob, 0.05, 0.2)

    print("KERNEL_OK")
</pallas_src>

<mosaic_0001>
module attributes {stable_mosaic.version = 11 : i64} {
  func.func @_xdropout_kernel(%arg0: i32, %arg1: memref<2xi32, #tpu.memory_space<smem>>, %arg2: memref<1x512xf32, #tpu.memory_space<vmem>>, %arg3: memref<1x512xf32, #tpu.memory_space<vmem>>) attributes {dimension_semantics = [#tpu.dimension_semantics<parallel>], iteration_bounds = array<i64: 1>, scalar_prefetch = 1 : i64, scratch_operands = 0 : i64, tpu.core_type = #tpu.core_type<tc>, window_params = [{transform_indices = @transform_0, window_bounds = array<i64: 1, 512>}, {transform_indices = @transform_1, window_bounds = array<i64: 1, 512>}]} {
    %c0 = arith.constant 0 : index
    %0 = memref.load %arg1[%c0] : memref<2xi32, #tpu.memory_space<smem>>
    %c1 = arith.constant 1 : index
    %1 = memref.load %arg1[%c1] : memref<2xi32, #tpu.memory_space<smem>>
    %2 = tpu.iota {dimensions = array<i32: 0>} : vector<1x1xi32>
    %c1_i32 = arith.constant 1 : i32
    %3 = arith.muli %arg0, %c1_i32 : i32
    %4 = vector.broadcast %3 : i32 to vector<1x1xi32>
    %5 = arith.addi %2, %4 : vector<1x1xi32>
    %6 = vector.broadcast %0 : i32 to vector<1x1xi32>
    %7 = arith.xori %5, %6 : vector<1x1xi32>
    %c-1640531535_i32 = arith.constant -1640531535 : i32
    %8 = vector.broadcast %c-1640531535_i32 : i32 to vector<1x1xi32>
    %9 = arith.muli %7, %8 : vector<1x1xi32>
    %c16_i32 = arith.constant 16 : i32
    %10 = vector.broadcast %c16_i32 : i32 to vector<1x1xi32>
    %11 = arith.shrui %9, %10 : vector<1x1xi32>
    %12 = arith.xori %9, %11 : vector<1x1xi32>
    %c-2048144789_i32 = arith.constant -2048144789 : i32
    %13 = vector.broadcast %c-2048144789_i32 : i32 to vector<1x1xi32>
    %14 = arith.muli %12, %13 : vector<1x1xi32>
    %c13_i32 = arith.constant 13 : i32
    %15 = vector.broadcast %c13_i32 : i32 to vector<1x1xi32>
    %16 = arith.shrui %14, %15 : vector<1x1xi32>
    %17 = arith.xori %14, %16 : vector<1x1xi32>
    %18 = tpu.iota {dimensions = array<i32: 1>} : vector<1x512xi32>
    %19 = vector.broadcast %1 : i32 to vector<1x512xi32>
    %20 = arith.xori %18, %19 : vector<1x512xi32>
    %c-1028477387_i32 = arith.constant -1028477387 : i32
    %21 = vector.broadcast %c-1028477387_i32 : i32 to vector<1x512xi32>
    %22 = arith.muli %20, %21 : vector<1x512xi32>
    %c16_i32_0 = arith.constant 16 : i32
    %23 = vector.broadcast %c16_i32_0 : i32 to vector<1x512xi32>
    %24 = arith.shrui %22, %23 : vector<1x512xi32>
    %25 = arith.xori %22, %24 : vector<1x512xi32>
    %c668265263_i32 = arith.constant 668265263 : i32
    %26 = vector.broadcast %c668265263_i32 : i32 to vector<1x512xi32>
    %27 = arith.muli %25, %26 : vector<1x512xi32>
    %c13_i32_1 = arith.constant 13 : i32
    %28 = vector.broadcast %c13_i32_1 : i32 to vector<1x512xi32>
    %29 = arith.shrui %27, %28 : vector<1x512xi32>
    %30 = arith.xori %27, %29 : vector<1x512xi32>
    %31 = vector.broadcast %17 : vector<1x1xi32> to vector<1x512xi32>
    %32 = arith.addi %31, %30 : vector<1x512xi32>
    %c16_i32_2 = arith.constant 16 : i32
    %33 = vector.broadcast %c16_i32_2 : i32 to vector<1x512xi32>
    %34 = arith.shrui %32, %33 : vector<1x512xi32>
    %35 = arith.xori %32, %34 : vector<1x512xi32>
    %c2146121005_i32 = arith.constant 2146121005 : i32
    %36 = vector.broadcast %c2146121005_i32 : i32 to vector<1x512xi32>
    %37 = arith.muli %35, %36 : vector<1x512xi32>
    %c13_i32_3 = arith.constant 13 : i32
    %38 = vector.broadcast %c13_i32_3 : i32 to vector<1x512xi32>
    %39 = arith.shrui %37, %38 : vector<1x512xi32>
    %40 = arith.xori %37, %39 : vector<1x512xi32>
    %c2147483647_i32 = arith.constant 2147483647 : i32
    %41 = vector.broadcast %c2147483647_i32 : i32 to vector<1x512xi32>
    %42 = arith.andi %40, %41 : vector<1x512xi32>
    %c1932735283_i32 = arith.constant 1932735283 : i32
    %43 = vector.broadcast %c1932735283_i32 : i32 to vector<1x512xi32>
    %44 = arith.cmpi slt, %42, %43 : vector<1x512xi32>
    %c0_4 = arith.constant 0 : index
    %c0_5 = arith.constant 0 : index
    %45 = vector.load %arg2[%c0_4, %c0_5] : memref<1x512xf32, #tpu.memory_space<vmem>>, vector<1x512xf32>
    %cst = arith.constant 1.11111116 : f32
    %46 = vector.broadcast %cst : f32 to vector<1x512xf32>
    %47 = arith.mulf %45, %46 : vector<1x512xf32>
    %cst_6 = arith.constant 0.000000e+00 : f32
    %48 = vector.broadcast %cst_6 : f32 to vector<1x512xf32>
    %49 = arith.select %44, %47, %48 : vector<1x512xi1>, vector<1x512xf32>
    %c0_7 = arith.constant 0 : index
    %c0_8 = arith.constant 0 : index
    %50 = vector.load %arg3[%c0_7, %c0_8] : memref<1x512xf32, #tpu.memory_space<vmem>>, vector<1x512xf32>
    tpu.vector_store %arg3[%c0_7, %c0_8], %49 {strides = array<i32>} : memref<1x512xf32, #tpu.memory_space<vmem>>, vector<1x512xf32>,
    return
  }
  func.func @transform_0(%arg0: i32, %arg1: memref<2xi32, #tpu.memory_space<smem>>) -> (i32, i32) {
    %c0_i32 = arith.constant 0 : i32
    %c0_i32_0 = arith.constant 0 : i32
    return %arg0, %c0_i32 : i32, i32
  }
  func.func @transform_1(%arg0: i32, %arg1: memref<2xi32, #tpu.memory_space<smem>>) -> (i32, i32) {
    %c0_i32 = arith.constant 0 : i32
    %c0_i32_0 = arith.constant 0 : i32
    return %arg0, %c0_i32 : i32, i32
  }
}

</mosaic_0001>

<llo_original>
// kernel: tpu_custom_call.1
$region0: #{tpu_custom_call.1}
  #allocation0 [shape = 'u32[]', space=smem, size = 0x4, offset = 0x4, fixed_abs, tag = 'smem constant byte address 0x4 - core index']
  #allocation1 [shape = 'u32[72,128]{1,0:T(1,128)}', space=vmem, size = 0x9000, scoped, tag = 'internal scratch']
  #allocation2 [shape = 's32[1]{0}', space=sflag, size = 0x4, scoped, tag = 'scoped memory for tpu_custom_call.1']
  #allocation3 [shape = 'u8[512]{0}', space=smem, size = 0x200, scoped, tag = 'prefetched SMEM operand 0']
  %s0 = inlined_call_operand.hbm [shape: s32[2], index: 0, kind: input, shape index: {}]
  %s1 = inlined_call_operand.hbm [shape: f32[1,512], index: 1, kind: input, shape index: {}]
  %s2 = inlined_call_operand.hbm [shape: f32[1,512], index: 2, kind: output, shape index: {}]
  %s3 = sld [smem:[#allocation0]]
  $region18: #{tpu_custom_call.1} parent=0
    _
  %s5 = ssub.s32 1, %s3
  %s6 = scalar_select 0, %s5, %s3
  %s8 = sshll.u32 %s0, 4
  %s9 = int_to_ptr.hbm [resolvable:$true] %s8
  %11 = dma.hbm_to_smem %s9, 16, [#allocation3], [#allocation2]
  %13 = dma.done [#allocation2], 16
  %14 = sfence
  $region1: #{tpu_custom_call.1} parent=0
    #allocation4 [shape = 'u8[2048]{0}', space=vmem, size = 0x800, scoped, tag = 'input window, operand 1, single buffered']
    #allocation5 [shape = 's32[1]{0}', space=sflag, size = 0x4, scoped, tag = 'scoped memory for tpu_custom_call.1']
    #allocation6 [shape = 's32[1]{0}', space=sflag, size = 0x4, scoped, tag = 'scoped memory for tpu_custom_call.1']
    #allocation7 [shape = 'u8[2048]{0}', space=vmem, size = 0x800, scoped, tag = 'output window, operand 0, single buffered']
    %15 = vsyncpa [#allocation5], 0
    %16 = vsyncpa [#allocation6], 0
    // Predicated region
    $region2: #{tpu_custom_call.1} parent=1 // pred_check
      _
    $region3: #{tpu_custom_call.1} parent=1 // pred_check_branch
      %18 = sbr.rel (0) target = $region5
    $region4: #{tpu_custom_call.1} parent=1 // pred_region
      %20 = vsyncadd [#allocation5], 0
      %s22 = sshll.u32 %s1, 4
      %s23 = int_to_ptr.hbm [resolvable:$true] %s22
      %s24 = sshll.u32 [#allocation4], 4
      %s25 = int_to_ptr.vmem [resolvable:$true] %s24
      %27 = dma.hbm_to_vmem [thread:$0]  %s23, 64, %s25, [#allocation5]
    $region5: #{tpu_custom_call.1} parent=1 // pred_fallthru
      _
    // Predicated region
    $region6: #{tpu_custom_call.1} parent=1 // pred_check
      _
    $region7: #{tpu_custom_call.1} parent=1 // pred_check_branch
      %29 = sbr.rel (0) target = $region9
    $region8: #{tpu_custom_call.1} parent=1 // pred_region
      %31 = dma.done [#allocation5], 64
    $region9: #{tpu_custom_call.1} parent=1 // pred_fallthru
      _
    %s32 = sld [smem:[#allocation3]]
    %s33 = sld [smem:[#allocation3 + $0x1]]
    %v34 = vlaneseq
    %v35 = vshrl.u32 %v34, 7
    %v36 = vstv 0
    %v37 = vadd.s32 %v35, %v36
    %v38 = vstv %s32
    %v39 = vxor.u32 %v37, %v38
    %v40 = vmul.u32 %v39, 2654435761
    %v41 = vshrl.u32 %v40, 16
    %v42 = vxor.u32 %v40, %v41
    %v43 = vmul.u32 %v42, 2246822507
    %v44 = vshrl.u32 %v43, 13
    %v45 = vxor.u32 %v43, %v44
    %v46 = vlaneseq
    %v47 = vand.u32 %v46, 127
    %v48 = vadd.s32 %v47, 128
    %v49 = vadd.s32 %v47, 256
    %v50 = vadd.s32 %v47, 384
    %v51 = vstv %s33
    %v52 = vxor.u32 %v47, %v51
    %v53 = vxor.u32 %v48, %v51
    %v54 = vxor.u32 %v49, %v51
    %v55 = vxor.u32 %v50, %v51
    %v56 = vmul.u32 %v52, 3266489909
    %v57 = vmul.u32 %v53, 3266489909
    %v58 = vmul.u32 %v54, 3266489909
    %v59 = vmul.u32 %v55, 3266489909
    %v60 = vshrl.u32 %v56, 16
    %v61 = vshrl.u32 %v57, 16
    %v62 = vshrl.u32 %v58, 16
    %v63 = vshrl.u32 %v59, 16
    %v64 = vxor.u32 %v56, %v60
    %v65 = vxor.u32 %v57, %v61
    %v66 = vxor.u32 %v58, %v62
    %v67 = vxor.u32 %v59, %v63
    %v68 = vmul.u32 %v64, 668265263
    %v69 = vmul.u32 %v65, 668265263
    %v70 = vmul.u32 %v66, 668265263
    %v71 = vmul.u32 %v67, 668265263
    %v72 = vshrl.u32 %v68, 13
    %v73 = vshrl.u32 %v69, 13
    %v74 = vshrl.u32 %v70, 13
    %v75 = vshrl.u32 %v71, 13
    %v76 = vxor.u32 %v68, %v72
    %v77 = vxor.u32 %v69, %v73
    %v78 = vxor.u32 %v70, %v74
    %v79 = vxor.u32 %v71, %v75
    %v80 = vadd.s32 %v45, %v76
    %v81 = vadd.s32 %v45, %v77
    %v82 = vadd.s32 %v45, %v78
    %v83 = vadd.s32 %v45, %v79
    %v84 = vshrl.u32 %v80, 16
    %v85 = vshrl.u32 %v81, 16
    %v86 = vshrl.u32 %v82, 16
    %v87 = vshrl.u32 %v83, 16
    %v88 = vxor.u32 %v80, %v84
    %v89 = vxor.u32 %v81, %v85
    %v90 = vxor.u32 %v82, %v86
    %v91 = vxor.u32 %v83, %v87
    %v92 = vmul.u32 %v88, 2146121005
    %v93 = vmul.u32 %v89, 2146121005
    %v94 = vmul.u32 %v90, 2146121005
    %v95 = vmul.u32 %v91, 2146121005
    %v96 = vshrl.u32 %v92, 13
    %v97 = vshrl.u32 %v93, 13
    %v98 = vshrl.u32 %v94, 13
    %v99 = vshrl.u32 %v95, 13
    %v100 = vxor.u32 %v92, %v96
    %v101 = vxor.u32 %v93, %v97
    %v102 = vxor.u32 %v94, %v98
    %v103 = vxor.u32 %v95, %v99
    %v104 = vand.u32 %v100, 2147483647
    %v105 = vand.u32 %v101, 2147483647
    %v106 = vand.u32 %v102, 2147483647
    %v107 = vand.u32 %v103, 2147483647
    %vm108 = vcmp.lt.s32.totalorder %v104, 1932735283
    %vm109 = vcmp.lt.s32.totalorder %v105, 1932735283
    %vm110 = vcmp.lt.s32.totalorder %v106, 1932735283
    %vm111 = vcmp.lt.s32.totalorder %v107, 1932735283
    %v112 = vld [vmem:[#allocation4] sm:$0xf]
    %v113 = vmul.f32 %v112, 1.1111112
    %v115 = vperm.slane %v113, 0
    %v116 = vperm.slane %v113, 1
    %v117 = vperm.slane %v113, 2
    %v118 = vperm.slane %v113, 3
    %v123 = vsel %vm108, %v115, 0.0
    %v124 = vsel %vm109, %v116, 0.0
    %v125 = vsel %vm110, %v117, 0.0
    %v126 = vsel %vm111, %v118, 0.0
    %v131 = vrot.slane %v124, 7
    %v132 = vrot.slane %v125, 6
    %v133 = vrot.slane %v126, 5
    %vm134 = vcmask 1040384
    %v135 = vsel %vm134, %v123, %v131
    %vm136 = vcmask 1042434
    %v137 = vsel %vm136, %v132, %v133
    %vm138 = vcmask 1041408
    %v139 = vsel %vm138, %v135, %v137
    %v141 = vlaneseq
    %vm142 = vcmp.ge.s32.totalorder %v141, 0
    %vm143 = vcmp.lt.s32.totalorder %v141, 512
    %vm144 = vmand %vm142, %vm143
    %145 = vst.msk [vmem:[#allocation7] sm:$0xf] %vm144, %v139
    // Predicated region
    $region10: #{tpu_custom_call.1} parent=1 // pred_check
      _
    $region11: #{tpu_custom_call.1} parent=1 // pred_check_branch
      %147 = sbr.rel (0) target = $region13
    $region12: #{tpu_custom_call.1} parent=1 // pred_region
      %149 = vsyncadd [#allocation6], 0
      %s151 = sshll.u32 [#allocation7], 4
      %s152 = int_to_ptr.vmem [resolvable:$true] %s151
      %s153 = sshll.u32 %s2, 4
      %s154 = int_to_ptr.hbm [resolvable:$true] %s153
      %156 = dma.vmem_to_hbm [thread:$0]  %s152, 64, %s154, [#allocation6]
    $region13: #{tpu_custom_call.1} parent=1 // pred_fallthru
      _
    // Predicated region
    $region14: #{tpu_custom_call.1} parent=1 // pred_check
      _
    $region15: #{tpu_custom_call.1} parent=1 // pred_check_branch
      %158 = sbr.rel (0) target = $region17
    $region16: #{tpu_custom_call.1} parent=1 // pred_region
      %160 = dma.done [#allocation6], 64
    $region17: #{tpu_custom_call.1} parent=1 // pred_fallthru
      _
    %161 = vsyncpa [#allocation5], 1
    %162 = vsyncpa [#allocation6], 1

</llo_original>
